<compile_context>
chip_gen: v7x
topology: tpu7x:2x2x1
jax: 0.10.0
libtpu: 0.0.40
codegen_flags: <defaults>
</compile_context>

<pallas_src>
import math

import jax
import jax.numpy as jnp
from jax.experimental import pallas as pl
from jax.experimental.pallas import tpu as pltpu


def make_pos_enc(d_model: int, max_seq_len: int = 6) -> jnp.ndarray:
    """Sinusoidal positional-encoding buffer [1, max_seq_len, d_model] (init-time)."""
    assert d_model % 2 == 0, "d_model must be even (odd d_model misaligns cos columns)"
    pos = jnp.arange(0, max_seq_len, dtype=jnp.float32)[:, None]              # [L, 1]
    div_term = jnp.exp(
        jnp.arange(0, d_model, 2, dtype=jnp.float32) * (-math.log(10000.0) / d_model)
    )                                                                          # [D/2]
    pe = jnp.zeros((max_seq_len, d_model), dtype=jnp.float32)
    pe = pe.at[:, 0::2].set(jnp.sin(pos * div_term))
    pe = pe.at[:, 1::2].set(jnp.cos(pos * div_term))
    return pe[None, :, :]                                                      # [1, L, D]


def _pe_add_kernel(x_ref, pe_ref, o_ref):
    # Used by both paths:
    #   flattened: (TR, D) + (TR, D)      -> (TR, D)
    #   fallback : (TB, S, D) + (1, S, D) -> (TB, S, D)  (broadcast over leading dim)
    # The pe block index is constant across the grid, so it is DMA'd once and stays
    # resident; x/out blocks stream through the auto-pipeline.
    o_ref[...] = x_ref[...] + pe_ref[...]


class PositionalEncoding:
    """JAX/Pallas port of the PyTorch PositionalEncoding module."""

    def __init__(self, d_model: int, max_seq_len: int = 6, *,
                 target_block_bytes: int = 4 << 20,      # ~4 MiB row blocks (v5e/v6e/v7x)
                 min_pallas_bytes: int = 1 << 20):       # below this: plain-JAX fused add
        self.d_model = d_model
        self.max_seq_len = max_seq_len
        self.pos_enc = make_pos_enc(d_model, max_seq_len)     # buffer, built once
        self.target_block_bytes = target_block_bytes
        self.min_pallas_bytes = min_pallas_bytes
        self._pe_cache = {}                                    # (kind, ...) -> jnp array

    # ---- cached pe variants (built once per (S, TR, dtype); no hot-path dispatch) ----
    def _pe_sliced(self, S, dtype):
        key = ("slice", S, jnp.dtype(dtype).name)
        if key not in self._pe_cache:
            self._pe_cache[key] = self.pos_enc[0, :S, :].astype(dtype)         # [S, D]
        return self._pe_cache[key]

    def _pe_tiled(self, S, TR, dtype):
        key = ("tiled", S, TR, jnp.dtype(dtype).name)
        if key not in self._pe_cache:
            self._pe_cache[key] = jnp.tile(self._pe_sliced(S, dtype), (TR // S, 1))
        return self._pe_cache[key]

    # ---------------------------------- forward ---------------------------------------
    def __call__(self, x: jnp.ndarray, *, donate_x: bool = False,
                 force_pallas: bool = False) -> jnp.ndarray:
        B, S, D = x.shape
        assert S <= self.max_seq_len, "sequence length exceeds positional-encoding table"
        assert D == self.d_model
        dtype = x.dtype
        itemsize = jnp.dtype(dtype).itemsize
        total_bytes = B * S * D * itemsize

        # Small-input bypass: let XLA fuse the broadcast add (pallas dispatch dominates).
        if total_bytes < self.min_pallas_bytes and not force_pallas:
            return x + self._pe_sliced(S, dtype)[None, :, :]

        # Dtype-aware sublane packing alignment: 8 rows (f32), 16 (bf16), 32 (int8/fp8).
        sub = max(8, 32 // itemsize)
        k0 = sub // math.gcd(S, sub)          # smallest k with (k * S) % sub == 0
        io_alias = {0: 0} if donate_x else {}

        if k0 <= B:
            # ---------------- flattened lane-dense path: [B*S, D] row blocks ----------
            R = B * S
            unit = k0 * S                                     # smallest legal row tile
            unit_bytes = unit * D * itemsize
            units_total = -(-B // k0)                         # ceil(B / k0)
            # Upper bounds: (a) ~target_block_bytes per block, (b) >= ~4 grid steps when
            # the input is large enough (so v7x megacore shards row blocks across 2 TCs).
            n_units = max(1, min(max(1, self.target_block_bytes // unit_bytes),
                                 max(1, units_total // 4)))
            TR = n_units * unit
            assert TR % S == 0 and TR % sub == 0, "row tile must stay S- and sublane-aligned"

            block_bytes = TR * D * itemsize
            # Footprint ~ 2x (x) + 2x (out) + 2x (pe, fetched once) blocks. Raise the
            # scoped VMEM limit explicitly so 4 MiB blocks also fit v5e's 16 MiB default.
            vmem_limit = max(32 << 20, 6 * block_bytes + (2 << 20))

            x2 = x.reshape(R, D)
            pe_tiled = self._pe_tiled(S, TR, dtype)           # cached, built once

            out2 = pl.pallas_call(
                _pe_add_kernel,
                out_shape=jax.ShapeDtypeStruct((R, D), dtype),
                grid_spec=pltpu.PrefetchScalarGridSpec(
                    num_scalar_prefetch=0,
                    grid=(pl.cdiv(R, TR),),
                    in_specs=[
                        pl.BlockSpec((TR, D), lambda i: (i, 0)),   # x row block
                        pl.BlockSpec((TR, D), lambda i: (0, 0)),   # pe: constant, resident
                    ],
                    out_specs=pl.BlockSpec((TR, D), lambda i: (i, 0)),
                ),
                compiler_params=pltpu.CompilerParams(
                    dimension_semantics=("parallel",),
                    vmem_limit_bytes=vmem_limit,
                ),
                input_output_aliases=io_alias,
            )(x2, pe_tiled)
            return out2.reshape(B, S, D)

        # ---------------- bounded fallback: grid over batch with (TB, S, D) blocks ----
        # S and D are full-extent dims, so they are exempt from the (8,128) rule; the
        # block size stays bounded by target_block_bytes instead of one giant slab.
        seq_bytes = S * D * itemsize
        TB = max(1, min(max(1, self.target_block_bytes // seq_bytes), max(1, B // 4)))
        block_bytes = TB * seq_bytes
        vmem_limit = max(32 << 20, 6 * block_bytes + (2 << 20))
        pe3 = self._pe_sliced(S, dtype)[None, :, :]                      # [1, S, D]

        out = pl.pallas_call(
            _pe_add_kernel,
            out_shape=jax.ShapeDtypeStruct((B, S, D), dtype),
            grid_spec=pltpu.PrefetchScalarGridSpec(
                num_scalar_prefetch=0,
                grid=(pl.cdiv(B, TB),),
                in_specs=[
                    pl.BlockSpec((TB, S, D), lambda i: (i, 0, 0)),       # x batch block
                    pl.BlockSpec((1, S, D), lambda i: (0, 0, 0)),        # pe: constant
                ],
                out_specs=pl.BlockSpec((TB, S, D), lambda i: (i, 0, 0)),
            ),
            compiler_params=pltpu.CompilerParams(
                dimension_semantics=("parallel",),
                vmem_limit_bytes=vmem_limit,
            ),
            input_output_aliases=io_alias,
        )(x, pe3)
        return out


if __name__ == "__main__":
    # Case 1: flattened lane-dense path, multi-step grid (f32, S == max_seq_len).
    mod1 = PositionalEncoding(128, max_seq_len=6)
    x1 = jax.random.normal(jax.random.PRNGKey(0), (16, 6, 128), dtype=jnp.float32)
    out1 = jax.block_until_ready(mod1(x1, force_pallas=True))
    ref1 = x1 + mod1.pos_enc[:, :6, :].astype(x1.dtype)
    assert out1.shape == x1.shape
    assert jnp.allclose(out1, ref1, atol=1e-6), "mismatch (flattened f32 path)"

    # Case 2: bf16, dtype-aware (16-row) tiles and a clipped partial last block
    # (B=20, k0=8 -> 3 grid steps, last block covers only 4 of 8 sequences).
    mod2 = PositionalEncoding(256, max_seq_len=6)
    x2 = jax.random.normal(jax.random.PRNGKey(0), (20, 6, 256), dtype=jnp.bfloat16)
    out2 = jax.block_until_ready(mod2(x2, force_pallas=True))
    ref2 = x2 + mod2.pos_enc[:, :6, :].astype(x2.dtype)
    assert jnp.allclose(out2.astype(jnp.float32), ref2.astype(jnp.float32),
                        atol=1e-2), "mismatch (flattened bf16 path)"

    # Case 3: bounded 3-D fallback (S=5 with tiny B -> no legal aligned row tile).
    mod3 = PositionalEncoding(128, max_seq_len=6)
    x3 = jax.random.normal(jax.random.PRNGKey(0), (4, 5, 128), dtype=jnp.float32)
    out3 = jax.block_until_ready(mod3(x3, force_pallas=True))
    ref3 = x3 + mod3.pos_enc[:, :5, :].astype(x3.dtype)
    assert jnp.allclose(out3, ref3, atol=1e-6), "mismatch (3-D fallback path)"

    # Case 4: small-input plain-JAX bypass (default threshold).
    mod4 = PositionalEncoding(32, max_seq_len=6)
    x4 = jax.random.normal(jax.random.PRNGKey(0), (2, 6, 32), dtype=jnp.float32)
    out4 = jax.block_until_ready(mod4(x4))
    ref4 = x4 + mod4.pos_enc[:, :6, :].astype(x4.dtype)
    assert jnp.allclose(out4, ref4, atol=1e-6), "mismatch (bypass path)"

    print("KERNEL_OK")
</pallas_src>

<mosaic_0001>
module attributes {stable_mosaic.version = 11 : i64} {
  func.func @_pe_add_kernel(%arg0: i32, %arg1: memref<24x128xf32, #tpu.memory_space<vmem>>, %arg2: memref<24x128xf32, #tpu.memory_space<vmem>>, %arg3: memref<24x128xf32, #tpu.memory_space<vmem>>) attributes {dimension_semantics = [#tpu.dimension_semantics<parallel>], iteration_bounds = array<i64: 4>, scalar_prefetch = 0 : i64, scratch_operands = 0 : i64, tpu.core_type = #tpu.core_type<tc>, window_params = [{transform_indices = @transform_0, window_bounds = array<i64: 24, 128>}, {pipeline_mode = #tpu.pipeline_mode<synchronous>, transform_indices = @transform_1, window_bounds = array<i64: 24, 128>}, {transform_indices = @transform_2, window_bounds = array<i64: 24, 128>}]} {
    %c0 = arith.constant 0 : index
    %c0_0 = arith.constant 0 : index
    %0 = vector.load %arg1[%c0, %c0_0] : memref<24x128xf32, #tpu.memory_space<vmem>>, vector<24x128xf32>
    %c0_1 = arith.constant 0 : index
    %c0_2 = arith.constant 0 : index
    %1 = vector.load %arg2[%c0_1, %c0_2] : memref<24x128xf32, #tpu.memory_space<vmem>>, vector<24x128xf32>
    %2 = arith.addf %0, %1 : vector<24x128xf32>
    %c0_3 = arith.constant 0 : index
    %c0_4 = arith.constant 0 : index
    %3 = vector.load %arg3[%c0_3, %c0_4] : memref<24x128xf32, #tpu.memory_space<vmem>>, vector<24x128xf32>
    tpu.vector_store %arg3[%c0_3, %c0_4], %2 {strides = array<i32>} : memref<24x128xf32, #tpu.memory_space<vmem>>, vector<24x128xf32>,
    return
  }
  func.func @transform_0(%arg0: i32) -> (i32, i32) {
    %c0_i32 = arith.constant 0 : i32
    %c0_i32_0 = arith.constant 0 : i32
    return %arg0, %c0_i32 : i32, i32
  }
  func.func @transform_1(%arg0: i32) -> (i32, i32) {
    %c0_i32 = arith.constant 0 : i32
    %c0_i32_0 = arith.constant 0 : i32
    %c0_i32_1 = arith.constant 0 : i32
    return %c0_i32, %c0_i32_0 : i32, i32
  }
  func.func @transform_2(%arg0: i32) -> (i32, i32) {
    %c0_i32 = arith.constant 0 : i32
    %c0_i32_0 = arith.constant 0 : i32
    return %arg0, %c0_i32 : i32, i32
  }
}

</mosaic_0001>

<llo_original>
// kernel: tpu_custom_call.1
$region0: #{tpu_custom_call.1}
  #allocation0 [shape = 'u32[]', space=smem, size = 0x4, offset = 0x4, fixed_abs, tag = 'smem constant byte address 0x4 - core index']
  #allocation1 [shape = 'u32[144,128]{1,0:T(1,128)}', space=vmem, size = 0x12000, scoped, tag = 'internal scratch']
  %s0 = inlined_call_operand.hbm [shape: f32[96,128], index: 0, kind: input, shape index: {}]
  %s1 = inlined_call_operand.hbm [shape: f32[24,128], index: 1, kind: input, shape index: {}]
  %s2 = inlined_call_operand.hbm [shape: f32[96,128], index: 2, kind: output, shape index: {}]
  %s3 = sld [smem:[#allocation0]]
  $region49: #{tpu_custom_call.1} parent=0
    _
  %s5 = ssub.s32 1, %s3
  %s6 = scalar_select 0, %s5, %s3
  $region1: #{tpu_custom_call.1} parent=0
    #allocation2 [shape = 'u8[24576]{0}', space=vmem, size = 0x6000, scoped, tag = 'input window, operand 0']
    #allocation3 [shape = 's32[2]{0}', space=sflag, size = 0x8, scoped, tag = 'scoped memory for tpu_custom_call.1']
    #allocation4 [shape = 's32[2]{0}', space=sflag, size = 0x8, scoped, tag = 'scoped memory for tpu_custom_call.1']
    #allocation5 [shape = 'u8[12288]{0}', space=vmem, size = 0x3000, scoped, tag = 'input window, operand 1, single buffered']
    #allocation6 [shape = 's32[1]{0}', space=sflag, size = 0x4, scoped, tag = 'scoped memory for tpu_custom_call.1']
    #allocation7 [shape = 'u8[24576]{0}', space=vmem, size = 0x6000, scoped, tag = 'output window, operand 0']
    %7 = vsyncpa [#allocation3], 0
    %s8 = scalar_lea.sflag [#allocation3], 1
    %9 = vsyncpa %s8, 0
    %10 = vsyncpa [#allocation6], 0
    %11 = vsyncpa [#allocation4], 0
    %s12 = scalar_lea.sflag [#allocation4], 1
    %13 = vsyncpa %s12, 0
    loop: start=0, step=1, limit=6
    $region2: #{tpu_custom_call.1} parent=1 // loop_pre_header
      _
    $region3: #{tpu_custom_call.1} parent=1 // loop_header
      %s15 = sphi 0, %s19
      %p16 = scmp.ge.s32.totalorder %s15, 6
      %s25 = sphi 0, %s27
      %s28 = sphi 0, %s25
      %s29 = sphi 0, %s28
      %s45 = sphi 0, %s29
      %s49 = sphi 0, %s49
      %s51 = sphi 0, %s49
      %s52 = sphi 0, %s51
      %s66 = sphi 0, %s52
      %s72 = sphi 0, %s74
      %s75 = sphi 0, %s72
      %s76 = sphi 0, %s75
      %s92 = sphi 0, %s76
    $region4: #{tpu_custom_call.1} parent=1 // loop_header_branch
      %18 = sbr.rel (%p16) target = $region8
    $region5: #{tpu_custom_call.1} parent=1 // loop_body
      %s20 = ssub.s32 %s15, 1
      %s21 = ssub.s32 %s15, 2
      %s22 = sadd.s32 %s15, 1
      %s23 = ssub.s32 %s15, %s22
      %p24 = scmp.eq.s32.totalorder %s23, 0
      %s26 = sadd.s32 %s25, 1
      %s27 = scalar_select %p24, %s25, %s26
      %p30 = pneg %p24
      %p31 = scmp.eq.s32.totalorder %s15, 3
      %p32 = por %p30, %p31
      %p33 = scmp.ne.s32.totalorder %s25, %s28
      %p34 = scmp.eq.s32.totalorder %s15, 0
      %p35 = por %p33, %p34
      %p36 = scmp.ne.s32.totalorder %s25, %s28
      %p37 = scmp.eq.s32.totalorder %s20, 3
      %p38 = por %p36, %p37
      %p39 = scmp.ne.s32.totalorder %s28, %s29
      %p40 = scmp.eq.s32.totalorder %s20, 0
      %p41 = por %p39, %p40
      %p42 = scmp.ne.s32.totalorder %s28, %s29
      %p43 = scmp.eq.s32.totalorder %s21, 3
      %p44 = por %p42, %p43
      %p46 = scmp.ne.s32.totalorder %s29, %s45
      %p47 = scmp.eq.s32.totalorder %s21, 0
      %p48 = por %p46, %p47
      %s50 = sadd.s32 %s49, 1
      %p53 = scmp.eq.s32.totalorder %s15, 3
      %p54 = scmp.ne.s32.totalorder %s49, %s51
      %p55 = scmp.eq.s32.totalorder %s15, 0
      %p56 = por %p54, %p55
      %p57 = scmp.ne.s32.totalorder %s49, %s51
      %p58 = scmp.eq.s32.totalorder %s20, 3
      %p59 = por %p57, %p58
      %p60 = scmp.ne.s32.totalorder %s51, %s52
      %p61 = scmp.eq.s32.totalorder %s20, 0
      %p62 = por %p60, %p61
      %p63 = scmp.ne.s32.totalorder %s51, %s52
      %p64 = scmp.eq.s32.totalorder %s21, 3
      %p65 = por %p63, %p64
      %p67 = scmp.ne.s32.totalorder %s52, %s66
      %p68 = scmp.eq.s32.totalorder %s21, 0
      %p69 = por %p67, %p68
      %s70 = ssub.s32 %s15, %s22
      %p71 = scmp.eq.s32.totalorder %s70, 0
      %s73 = sadd.s32 %s72, 1
      %s74 = scalar_select %p71, %s72, %s73
      %p77 = pneg %p71
      %p78 = scmp.eq.s32.totalorder %s15, 3
      %p79 = por %p77, %p78
      %p80 = scmp.ne.s32.totalorder %s72, %s75
      %p81 = scmp.eq.s32.totalorder %s15, 0
      %p82 = por %p80, %p81
      %p83 = scmp.ne.s32.totalorder %s72, %s75
      %p84 = scmp.eq.s32.totalorder %s20, 3
      %p85 = por %p83, %p84
      %p86 = scmp.ne.s32.totalorder %s75, %s76
      %p87 = scmp.eq.s32.totalorder %s20, 0
      %p88 = por %p86, %p87
      %p89 = scmp.ne.s32.totalorder %s75, %s76
      %p90 = scmp.eq.s32.totalorder %s21, 3
      %p91 = por %p89, %p90
      %p93 = scmp.ne.s32.totalorder %s76, %s92
      %p94 = scmp.eq.s32.totalorder %s21, 0
      %p95 = por %p93, %p94
      %p96 = scmp.le.s32.totalorder 1, %s15
      %p97 = scmp.lt.s32.totalorder %s15, 5
      %p98 = pnand %p96, %p97
      %p99 = pneg %p98
      // Predicated region
      $region9: #{tpu_custom_call.1} parent=5 // pred_check
        _
      $region10: #{tpu_custom_call.1} parent=5 // pred_check_branch
        %101 = sbr.rel (%p98) target = $region12
      $region11: #{tpu_custom_call.1} parent=5 // pred_region
        %s102 = ssub.s32 %s15, 1
        // Predicated region
        $region13: #{tpu_custom_call.1} parent=11 // pred_check
          %p103 = pneg %p62
        $region14: #{tpu_custom_call.1} parent=11 // pred_check_branch
          %105 = sbr.rel (%p103) target = $region16
        $region15: #{tpu_custom_call.1} parent=11 // pred_region
          %s107 = ssub.s32 384, 384
          %108 = vsyncadd [#allocation6], %s107
          %s109 = sshll.u32 [#allocation5], 4
          %s110 = int_to_ptr.vmem [resolvable:$true] %s109
          %115 = dma.hbm_to_vmem [thread:$0]  %s1, 384, %s110, [#allocation6], 128, 128, 8
        $region16: #{tpu_custom_call.1} parent=11 // pred_fallthru
          _
      $region12: #{tpu_custom_call.1} parent=5 // pred_fallthru
        _
      %p116 = scmp.lt.s32.totalorder %s15, 4
      // Predicated region
      $region17: #{tpu_custom_call.1} parent=5 // pred_check
        %p117 = pneg %p116
      $region18: #{tpu_custom_call.1} parent=5 // pred_check_branch
        %119 = sbr.rel (%p117) target = $region20
      $region19: #{tpu_custom_call.1} parent=5 // pred_region
        // Predicated region
        $region21: #{tpu_custom_call.1} parent=19 // pred_check
          %p120 = pneg %p35
        $region22: #{tpu_custom_call.1} parent=19 // pred_check_branch
          %122 = sbr.rel (%p120) target = $region24
        $region23: #{tpu_custom_call.1} parent=19 // pred_region
          %s123 = sand.u32 %s25, 1
          %s124 = scalar_lea.sflag [#allocation3], %s123
          %s125 = sand.u32 %s25, 1
          %s126 = smul.addr %s125, 24
          %s127 = scalar_lea.vmem [#allocation2], %s126
          %s128 = smul.u32 3, %s15
          %s130 = ssub.s32 384, 384
          %131 = vsyncadd %s124, %s130
          %s132 = smul.addr %s128, 128
          %s133 = scalar_lea.hbm %s0, %s132
          %s134 = sshll.u32 %s127, 4
          %s135 = int_to_ptr.vmem [resolvable:$true] %s134
          %140 = dma.hbm_to_vmem [thread:$0]  %s133, 384, %s135, %s124, 128, 128, 8
        $region24: #{tpu_custom_call.1} parent=19 // pred_fallthru
          _
      $region20: #{tpu_custom_call.1} parent=5 // pred_fallthru
        _
      %p141 = scmp.le.s32.totalorder 1, %s15
      %p142 = scmp.lt.s32.totalorder %s15, 5
      %p143 = pnand %p141, %p142
      %p144 = pneg %p143
      // Predicated region
      $region25: #{tpu_custom_call.1} parent=5 // pred_check
        _
      $region26: #{tpu_custom_call.1} parent=5 // pred_check_branch
        %146 = sbr.rel (%p143) target = $region28
      $region27: #{tpu_custom_call.1} parent=5 // pred_region
        %s147 = ssub.s32 %s15, 1
        %s148 = sand.u32 %s28, 1
        %s149 = scalar_lea.sflag [#allocation3], %s148
        %s150 = sand.u32 %s28, 1
        %s151 = smul.addr %s150, 24
        %s152 = scalar_lea.vmem [#allocation2], %s151
        // Predicated region
        $region29: #{tpu_custom_call.1} parent=27 // pred_check
          %p153 = pneg %p41
        $region30: #{tpu_custom_call.1} parent=27 // pred_check_branch
          %155 = sbr.rel (%p153) target = $region32
        $region31: #{tpu_custom_call.1} parent=27 // pred_region
          %156 = dma.done %s149, 384
        $region32: #{tpu_custom_call.1} parent=27 // pred_fallthru
          _
        // Predicated region
        $region33: #{tpu_custom_call.1} parent=27 // pred_check
          %p157 = pneg %p62
        $region34: #{tpu_custom_call.1} parent=27 // pred_check_branch
          %159 = sbr.rel (%p157) target = $region36
        $region35: #{tpu_custom_call.1} parent=27 // pred_region
          %160 = dma.done [#allocation6], 384
        $region36: #{tpu_custom_call.1} parent=27 // pred_fallthru
          _
        %s161 = sand.u32 %s28, 1
        %s162 = scalar_lea.sflag [#allocation3], %s161
        %s163 = sand.u32 %s28, 1
        %s164 = smul.addr %s163, 24
        %s165 = scalar_lea.vmem [#allocation2], %s164
        %p166 = pneg %p41
        %p167 = pneg %p38
        %p168 = pneg %p62
        %p169 = pneg %p59
        %p170 = pneg %p88
        %p171 = pneg %p85
        %s172 = sand.u32 %s75, 1
        %s173 = scalar_lea.sflag [#allocation4], %s172
        %s174 = sand.u32 %s75, 1
        %s175 = smul.addr %s174, 24
        %s176 = scalar_lea.vmem [#allocation7], %s175
        %s177 = smul.u32 3, %s20
        %s178 = smul.u32 3, %s20
        %v179 = vld [vmem:[%s152] sm:$0xff]
        %v180 = vld [vmem:[%s152 + $0x8] sm:$0xff]
        %v181 = vld [vmem:[%s152 + $0x10] sm:$0xff]
        %v182 = vld [vmem:[#allocation5] sm:$0xff]
        %v183 = vld [vmem:[#allocation5 + $0x8] sm:$0xff]
        %v184 = vld [vmem:[#allocation5 + $0x10] sm:$0xff]
        %v185 = vadd.f32 %v179, %v182
        %v186 = vadd.f32 %v180, %v183
        %v187 = vadd.f32 %v181, %v184
        %188 = vst [vmem:[%s176] sm:$0xff] %v185
        %189 = vst [vmem:[%s176 + $0x8] sm:$0xff] %v186
        %190 = vst [vmem:[%s176 + $0x10] sm:$0xff] %v187
        %s191 = sand.u32 %s75, 1
        %s192 = scalar_lea.sflag [#allocation4], %s191
        %s193 = sand.u32 %s75, 1
        %s194 = smul.addr %s193, 24
        %s195 = scalar_lea.vmem [#allocation7], %s194
        // Predicated region
        $region37: #{tpu_custom_call.1} parent=27 // pred_check
          %p196 = pneg %p85
        $region38: #{tpu_custom_call.1} parent=27 // pred_check_branch
          %198 = sbr.rel (%p196) target = $region40
        $region39: #{tpu_custom_call.1} parent=27 // pred_region
          %s199 = smul.u32 3, %s20
          %s201 = ssub.s32 384, 384
          %202 = vsyncadd %s192, %s201
          %s203 = smul.addr %s199, 128
          %s204 = scalar_lea.hbm %s2, %s203
          %s205 = sshll.u32 %s195, 4
          %s206 = int_to_ptr.vmem [resolvable:$true] %s205
          %211 = dma.vmem_to_hbm [thread:$0]  %s206, 384, %s204, %s192, 128, 128, 8
        $region40: #{tpu_custom_call.1} parent=27 // pred_fallthru
          _
      $region28: #{tpu_custom_call.1} parent=5 // pred_fallthru
        _
      %p212 = scmp.le.s32.totalorder 2, %s15
      // Predicated region
      $region41: #{tpu_custom_call.1} parent=5 // pred_check
        %p213 = pneg %p212
      $region42: #{tpu_custom_call.1} parent=5 // pred_check_branch
        %215 = sbr.rel (%p213) target = $region44
      $region43: #{tpu_custom_call.1} parent=5 // pred_region
        %s216 = ssub.s32 %s15, 2
        // Predicated region
        $region45: #{tpu_custom_call.1} parent=43 // pred_check
          %p217 = pneg %p91
        $region46: #{tpu_custom_call.1} parent=43 // pred_check_branch
          %219 = sbr.rel (%p217) target = $region48
        $region47: #{tpu_custom_call.1} parent=43 // pred_region
          %s220 = sand.u32 %s76, 1
          %s221 = scalar_lea.sflag [#allocation4], %s220
          %s222 = sand.u32 %s76, 1
          %s223 = smul.addr %s222, 24
          %s224 = scalar_lea.vmem [#allocation7], %s223
          %225 = dma.done %s221, 384
        $region48: #{tpu_custom_call.1} parent=43 // pred_fallthru
          _
      $region44: #{tpu_custom_call.1} parent=5 // pred_fallthru
        _
    $region6: #{tpu_custom_call.1} parent=1 // loop_footer
      %s19 = sadd.s32 1, %s15
    $region7: #{tpu_custom_call.1} parent=1 // loop_footer_branch
      %14 = sbr.rel target = $region3
    $region8: #{tpu_custom_call.1} parent=1 // loop_exit
      _
    %226 = vsyncpa [#allocation3], 1
    %s227 = scalar_lea.sflag [#allocation3], 1
    %228 = vsyncpa %s227, 1
    %229 = vsyncpa [#allocation6], 1
    %230 = vsyncpa [#allocation4], 1
    %s231 = scalar_lea.sflag [#allocation4], 1
    %232 = vsyncpa %s231, 1

</llo_original>
